<compile_context>
chip_gen: v7x
topology: tpu7x:2x2x1
jax: 0.10.0
libtpu: 0.0.40
codegen_flags: <defaults>
</compile_context>

<pallas_src>
import functools

import jax
import jax.numpy as jnp
from jax.experimental import pallas as pl
from jax.experimental.pallas import tpu as pltpu


def _round_up(n, m):
    return (n + m - 1) // m * m


def _device_kind():
    try:
        return jax.devices()[0].device_kind.lower()
    except Exception:
        return ""


def _mxu_width():
    k = _device_kind()
    return 256 if ("v6" in k or "v7" in k) else 128


def _vmem_limit_bytes():
    k = _device_kind()
    if "v7" in k:
        return 32 * 1024 * 1024   # v7x: only 64 MiB/TC physical -> conservative
    if "v5" in k:
        return 64 * 1024 * 1024   # v5e: 128 MiB physical, 16 MiB scoped default
    return 96 * 1024 * 1024       # v6e (and default): 128 MiB physical


def _lane_round(n):
    """Round a feature dim up to a lane-dense width.

    Prefer 256-multiples on 256-wide-MXU chips (v6e/v7x) when the extra
    padding is small (<= 12.5%); otherwise 128 (optimal on v5e's 128-wide MXU).
    """
    n128 = _round_up(n, 128)
    if _mxu_width() >= 256 and n >= 512:
        n256 = _round_up(n, 256)
        if (n256 - n) * 8 <= n:
            return n256
    return n128


def _pick_batch_tile(B):
    """Balanced batch tiles: <=1024 rows each, >=2 tiles once B >= 256 so the
    'parallel' batch grid axis can shard across v7x's two TensorCores and the
    BlockSpec pipeline has steps to overlap x/out DMAs with compute."""
    max_tb = 1024
    min_tiles = 2 if B >= 256 else 1
    n_tiles = max(min_tiles, pl.cdiv(B, max_tb))
    if n_tiles == 1:
        return B                                   # single tile == full batch dim
    return _round_up(pl.cdiv(B, n_tiles), 8)       # sublane-aligned, balanced


def _mlp_kernel(x_ref, w1_ref, w2_ref, w3_ref, b1_ref, b2_ref, b3_ref, o_ref):
    # bf16 MXU operands, f32 accumulation; bias add / ReLU / sigmoid stay f32.
    x = x_ref[...].astype(jnp.bfloat16)

    # Layer 1: Linear + ReLU
    h1 = jnp.dot(x, w1_ref[...], preferred_element_type=jnp.float32) + b1_ref[...]
    h1 = jnp.maximum(h1, 0.0).astype(jnp.bfloat16)

    # Layer 2: Linear + ReLU
    h2 = jnp.dot(h1, w2_ref[...], preferred_element_type=jnp.float32) + b2_ref[...]
    h2 = jnp.maximum(h2, 0.0).astype(jnp.bfloat16)

    # Layer 3: Linear + Sigmoid (lane-dense padded store; padding trimmed by
    # the consumer).
    h3 = jnp.dot(h2, w3_ref[...], preferred_element_type=jnp.float32) + b3_ref[...]
    o_ref[...] = jax.nn.sigmoid(h3).astype(o_ref.dtype)


def pack_params(params):
    """One-time packing: pad feature dims to lane-dense widths and cast weights
    to bf16. Each matrix is padded individually — W1 keeps its real in_size
    contraction rows (no zero-inflation when in_size << hidden)."""
    w1, b1 = params["w1"], params["b1"]
    w2, b2 = params["w2"], params["b2"]
    w3, b3 = params["w3"], params["b3"]

    in_size, hid = w1.shape
    out_size = w3.shape[1]
    hid_p = _lane_round(hid)
    out_p = _lane_round(out_size)

    def pad2(a, rows, cols):
        return jnp.pad(a, ((0, rows - a.shape[0]), (0, cols - a.shape[1])))

    return {
        "w1": pad2(w1, in_size, hid_p).astype(jnp.bfloat16),
        "w2": pad2(w2, hid_p, hid_p).astype(jnp.bfloat16),
        "w3": pad2(w3, hid_p, out_p).astype(jnp.bfloat16),
        "b1": pad2(b1, 1, hid_p).astype(jnp.float32),
        "b2": pad2(b2, 1, hid_p).astype(jnp.float32),
        "b3": pad2(b3, 1, out_p).astype(jnp.float32),
        "in_size": in_size, "hid": hid, "out_size": out_size,
        "hid_p": hid_p, "out_p": out_p,
    }


def _call(x, packed, tb, grid_b, out_dtype, single_buffer_resident):
    in_size = packed["in_size"]
    hid_p, out_p = packed["hid_p"], packed["out_p"]
    w1, w2, w3 = packed["w1"], packed["w2"], packed["w3"]
    b1, b2, b3 = packed["b1"], packed["b2"], packed["b3"]
    B = x.shape[0]

    def resident(shape):
        # Constant index_map -> fetched once and kept VMEM-resident across all
        # batch tiles; single-buffering halves its VMEM footprint.
        if single_buffer_resident:
            return pl.BlockSpec(shape, lambda i: (0, 0),
                                pipeline_mode=pl.Buffered(1))
        return pl.BlockSpec(shape, lambda i: (0, 0))

    flops = 2 * B * (in_size * hid_p + hid_p * hid_p + hid_p * out_p)
    bytes_accessed = (x.size * x.dtype.itemsize
                      + (w1.size + w2.size + w3.size) * 2
                      + (b1.size + b2.size + b3.size) * 4
                      + B * out_p * jnp.dtype(out_dtype).itemsize)
    cost = pl.CostEstimate(
        flops=flops,
        transcendentals=B * out_p,          # one exp per sigmoid output element
        bytes_accessed=bytes_accessed,
    )

    return pl.pallas_call(
        _mlp_kernel,
        out_shape=jax.ShapeDtypeStruct((B, out_p), out_dtype),
        grid_spec=pltpu.PrefetchScalarGridSpec(
            num_scalar_prefetch=0,
            grid=(grid_b,),
            in_specs=[
                pl.BlockSpec((tb, in_size), lambda i: (i, 0)),   # x: batch-tiled
                resident(w1.shape),
                resident(w2.shape),
                resident(w3.shape),
                resident(b1.shape),
                resident(b2.shape),
                resident(b3.shape),
            ],
            out_specs=pl.BlockSpec((tb, out_p), lambda i: (i, 0)),
        ),
        compiler_params=pltpu.CompilerParams(
            dimension_semantics=("parallel",),   # shard batch tiles on v7x's 2 TCs
            vmem_limit_bytes=_vmem_limit_bytes(),
        ),
        cost_estimate=cost,
    )(x, w1, w2, w3, b1, b2, b3)


def three_layer_nn(x, packed, out_dtype=None):
    """Forward pass. x: [B, input_size] (f32 or bf16 — bf16 halves HBM traffic).

    Returns the LANE-PADDED output [B, out_p] (dense vst stores); the real
    columns are [:, :out_size]. Trim in the consumer (fused for free under a
    jitted consumer) instead of paying an extra HBM pass here.
    """
    if out_dtype is None:
        out_dtype = x.dtype
    B = x.shape[0]
    tb = _pick_batch_tile(B)
    grid_b = pl.cdiv(B, tb)

    # TODO(synk): for very large hidden sizes (resident bf16 weights + one batch
    # tile approaching ~48 MiB, i.e. hid_p >= ~4K on v7x's 64 MiB/TC VMEM),
    # switch to a tiled-K grid axis marked "arbitrary" with an f32 VMEM
    # accumulator instead of keeping all three weights resident.

    try:
        return _call(x, packed, tb, grid_b, out_dtype, single_buffer_resident=True)
    except Exception:
        # Fallback for JAX versions where pallas_call does not accept
        # pipeline_mode=pl.Buffered(1): default double-buffering is still
        # correct, just uses 2x VMEM for the resident weights.
        return _call(x, packed, tb, grid_b, out_dtype, single_buffer_resident=False)


def init_params(key, input_size, hidden_size, output_size):
    """Deterministic init mimicking PyTorch nn.Linear default (U(-1/sqrt(fan_in), +))."""
    def linear(key, fan_in, fan_out):
        k_w, k_b = jax.random.split(key)
        bound = 1.0 / jnp.sqrt(fan_in)
        # stored as [in, out] (transposed relative to torch's [out, in])
        w = jax.random.uniform(k_w, (fan_in, fan_out), jnp.float32, -bound, bound)
        b = jax.random.uniform(k_b, (1, fan_out), jnp.float32, -bound, bound)
        return w, b

    k1, k2, k3 = jax.random.split(key, 3)
    w1, b1 = linear(k1, input_size, hidden_size)
    w2, b2 = linear(k2, hidden_size, hidden_size)
    w3, b3 = linear(k3, hidden_size, output_size)
    return {"w1": w1, "b1": b1, "w2": w2, "b2": b2, "w3": w3, "b3": b3}


if __name__ == "__main__":
    key = jax.random.PRNGKey(0)
    k_x, k_p = jax.random.split(key)

    batch, input_size, hidden_size, output_size = 8, 32, 32, 16
    x = jax.random.normal(k_x, (batch, input_size), jnp.float32)
    params = init_params(k_p, input_size, hidden_size, output_size)

    packed = pack_params(params)                  # one-time pad + bf16 cast
    out_padded = three_layer_nn(x, packed)        # [B, out_p], lane-dense stores
    out = out_padded[:, :output_size]             # consumer-side trim of padding
    out = jax.block_until_ready(out)

    # Pure-JAX f32 reference (kernel uses bf16 MXU operands -> loosened tolerance)
    h = jnp.maximum(x @ params["w1"] + params["b1"], 0.0)
    h = jnp.maximum(h @ params["w2"] + params["b2"], 0.0)
    ref = jax.nn.sigmoid(h @ params["w3"] + params["b3"])

    assert out.shape == (batch, output_size)
    max_err = float(jnp.max(jnp.abs(out - ref)))
    assert max_err < 2e-2, f"mismatch vs reference (max abs err {max_err})"

    print("KERNEL_OK")
</pallas_src>

<mosaic_0001>
module attributes {stable_mosaic.version = 11 : i64} {
  func.func @_mlp_kernel(%arg0: i32, %arg1: memref<8x32xf32, #tpu.memory_space<vmem>>, %arg2: memref<32x128xbf16, #tpu.memory_space<vmem>>, %arg3: memref<128x128xbf16, #tpu.memory_space<vmem>>, %arg4: memref<128x128xbf16, #tpu.memory_space<vmem>>, %arg5: memref<1x128xf32, #tpu.memory_space<vmem>>, %arg6: memref<1x128xf32, #tpu.memory_space<vmem>>, %arg7: memref<1x128xf32, #tpu.memory_space<vmem>>, %arg8: memref<8x128xf32, #tpu.memory_space<vmem>>) attributes {dimension_semantics = [#tpu.dimension_semantics<parallel>], iteration_bounds = array<i64: 1>, scalar_prefetch = 0 : i64, scratch_operands = 0 : i64, tpu.core_type = #tpu.core_type<tc>, window_params = [{transform_indices = @transform_0, window_bounds = array<i64: 8, 32>}, {pipeline_mode = #tpu.pipeline_mode<synchronous>, transform_indices = @transform_1, window_bounds = array<i64: 32, 128>}, {pipeline_mode = #tpu.pipeline_mode<synchronous>, transform_indices = @transform_2, window_bounds = array<i64: 128, 128>}, {pipeline_mode = #tpu.pipeline_mode<synchronous>, transform_indices = @transform_3, window_bounds = array<i64: 128, 128>}, {pipeline_mode = #tpu.pipeline_mode<synchronous>, transform_indices = @transform_4, window_bounds = array<i64: 1, 128>}, {pipeline_mode = #tpu.pipeline_mode<synchronous>, transform_indices = @transform_5, window_bounds = array<i64: 1, 128>}, {pipeline_mode = #tpu.pipeline_mode<synchronous>, transform_indices = @transform_6, window_bounds = array<i64: 1, 128>}, {transform_indices = @transform_7, window_bounds = array<i64: 8, 128>}]} {
    %c0 = arith.constant 0 : index
    %c0_0 = arith.constant 0 : index
    %0 = vector.load %arg1[%c0, %c0_0] : memref<8x32xf32, #tpu.memory_space<vmem>>, vector<8x32xf32>
    %1 = arith.truncf %0 : vector<8x32xf32> to vector<8x32xbf16>
    %c0_1 = arith.constant 0 : index
    %c0_2 = arith.constant 0 : index
    %2 = vector.load %arg2[%c0_1, %c0_2] : memref<32x128xbf16, #tpu.memory_space<vmem>>, vector<32x128xbf16>
    %cst = arith.constant dense<0.000000e+00> : vector<8x128xf32>
    %3 = tpu.matmul %1, %2, %cst {dimension_numbers = #tpu.dot_dimension_numbers<[1], [0], [0], [1], [0, 0, 1, 1], [], []>} : vector<8x32xbf16>, vector<32x128xbf16>, vector<8x128xf32> -> vector<8x128xf32>
    %c0_3 = arith.constant 0 : index
    %c0_4 = arith.constant 0 : index
    %4 = vector.load %arg5[%c0_3, %c0_4] : memref<1x128xf32, #tpu.memory_space<vmem>>, vector<1x128xf32>
    %5 = vector.broadcast %4 : vector<1x128xf32> to vector<8x128xf32>
    %6 = arith.addf %3, %5 : vector<8x128xf32>
    %cst_5 = arith.constant 0.000000e+00 : f32
    %7 = vector.broadcast %cst_5 : f32 to vector<8x128xf32>
    %8 = arith.maximumf %6, %7 : vector<8x128xf32>
    %9 = arith.truncf %8 : vector<8x128xf32> to vector<8x128xbf16>
    %c0_6 = arith.constant 0 : index
    %c0_7 = arith.constant 0 : index
    %10 = vector.load %arg3[%c0_6, %c0_7] : memref<128x128xbf16, #tpu.memory_space<vmem>>, vector<128x128xbf16>
    %cst_8 = arith.constant dense<0.000000e+00> : vector<8x128xf32>
    %11 = tpu.matmul %9, %10, %cst_8 {dimension_numbers = #tpu.dot_dimension_numbers<[1], [0], [0], [1], [0, 0, 1, 1], [], []>} : vector<8x128xbf16>, vector<128x128xbf16>, vector<8x128xf32> -> vector<8x128xf32>
    %c0_9 = arith.constant 0 : index
    %c0_10 = arith.constant 0 : index
    %12 = vector.load %arg6[%c0_9, %c0_10] : memref<1x128xf32, #tpu.memory_space<vmem>>, vector<1x128xf32>
    %13 = vector.broadcast %12 : vector<1x128xf32> to vector<8x128xf32>
    %14 = arith.addf %11, %13 : vector<8x128xf32>
    %cst_11 = arith.constant 0.000000e+00 : f32
    %15 = vector.broadcast %cst_11 : f32 to vector<8x128xf32>
    %16 = arith.maximumf %14, %15 : vector<8x128xf32>
    %17 = arith.truncf %16 : vector<8x128xf32> to vector<8x128xbf16>
    %c0_12 = arith.constant 0 : index
    %c0_13 = arith.constant 0 : index
    %18 = vector.load %arg4[%c0_12, %c0_13] : memref<128x128xbf16, #tpu.memory_space<vmem>>, vector<128x128xbf16>
    %cst_14 = arith.constant dense<0.000000e+00> : vector<8x128xf32>
    %19 = tpu.matmul %17, %18, %cst_14 {dimension_numbers = #tpu.dot_dimension_numbers<[1], [0], [0], [1], [0, 0, 1, 1], [], []>} : vector<8x128xbf16>, vector<128x128xbf16>, vector<8x128xf32> -> vector<8x128xf32>
    %c0_15 = arith.constant 0 : index
    %c0_16 = arith.constant 0 : index
    %20 = vector.load %arg7[%c0_15, %c0_16] : memref<1x128xf32, #tpu.memory_space<vmem>>, vector<1x128xf32>
    %21 = vector.broadcast %20 : vector<1x128xf32> to vector<8x128xf32>
    %22 = arith.addf %19, %21 : vector<8x128xf32>
    %23 = arith.negf %22 : vector<8x128xf32>
    %24 = math.exp %23 : vector<8x128xf32>
    %cst_17 = arith.constant 1.000000e+00 : f32
    %25 = vector.broadcast %cst_17 : f32 to vector<8x128xf32>
    %26 = arith.addf %25, %24 : vector<8x128xf32>
    %27 = arith.divf %25, %26 : vector<8x128xf32>
    %c0_18 = arith.constant 0 : index
    %c0_19 = arith.constant 0 : index
    %28 = vector.load %arg8[%c0_18, %c0_19] : memref<8x128xf32, #tpu.memory_space<vmem>>, vector<8x128xf32>
    tpu.vector_store %arg8[%c0_18, %c0_19], %27 {strides = array<i32>} : memref<8x128xf32, #tpu.memory_space<vmem>>, vector<8x128xf32>,
    return
  }
  func.func @transform_0(%arg0: i32) -> (i32, i32) {
    %c0_i32 = arith.constant 0 : i32
    %c0_i32_0 = arith.constant 0 : i32
    return %arg0, %c0_i32 : i32, i32
  }
  func.func @transform_1(%arg0: i32) -> (i32, i32) {
    %c0_i32 = arith.constant 0 : i32
    %c0_i32_0 = arith.constant 0 : i32
    %c0_i32_1 = arith.constant 0 : i32
    return %c0_i32, %c0_i32_0 : i32, i32
  }
  func.func @transform_2(%arg0: i32) -> (i32, i32) {
    %c0_i32 = arith.constant 0 : i32
    %c0_i32_0 = arith.constant 0 : i32
    %c0_i32_1 = arith.constant 0 : i32
    return %c0_i32, %c0_i32_0 : i32, i32
  }
  func.func @transform_3(%arg0: i32) -> (i32, i32) {
    %c0_i32 = arith.constant 0 : i32
    %c0_i32_0 = arith.constant 0 : i32
    %c0_i32_1 = arith.constant 0 : i32
    return %c0_i32, %c0_i32_0 : i32, i32
  }
  func.func @transform_4(%arg0: i32) -> (i32, i32) {
    %c0_i32 = arith.constant 0 : i32
    %c0_i32_0 = arith.constant 0 : i32
    %c0_i32_1 = arith.constant 0 : i32
    return %c0_i32, %c0_i32_0 : i32, i32
  }
  func.func @transform_5(%arg0: i32) -> (i32, i32) {
    %c0_i32 = arith.constant 0 : i32
    %c0_i32_0 = arith.constant 0 : i32
    %c0_i32_1 = arith.constant 0 : i32
    return %c0_i32, %c0_i32_0 : i32, i32
  }
  func.func @transform_6(%arg0: i32) -> (i32, i32) {
    %c0_i32 = arith.constant 0 : i32
    %c0_i32_0 = arith.constant 0 : i32
    %c0_i32_1 = arith.constant 0 : i32
    return %c0_i32, %c0_i32_0 : i32, i32
  }
  func.func @transform_7(%arg0: i32) -> (i32, i32) {
    %c0_i32 = arith.constant 0 : i32
    %c0_i32_0 = arith.constant 0 : i32
    return %arg0, %c0_i32 : i32, i32
  }
}

module attributes {stable_mosaic.version = 11 : i64} {
  func.func @_mlp_kernel(%arg0: i32, %arg1: memref<8x32xf32, #tpu.memory_space<vmem>>, %arg2: memref<32x128xbf16, #tpu.memory_space<vmem>>, %arg3: memref<128x128xbf16, #tpu.memory_space<vmem>>, %arg4: memref<128x128xbf16, #tpu.memory_space<vmem>>, %arg5: memref<1x128xf32, #tpu.memory_space<vmem>>, %arg6: memref<1x128xf32, #tpu.memory_space<vmem>>, %arg7: memref<1x128xf32, #tpu.memory_space<vmem>>, %arg8: memref<8x128xf32, #tpu.memory_space<vmem>>) attributes {dimension_semantics = [#tpu.dimension_semantics<parallel>], iteration_bounds = array<i64: 1>, scalar_prefetch = 0 : i64, scratch_operands = 0 : i64, tpu.core_type = #tpu.core_type<tc>, window_params = [{transform_indices = @transform_0, window_bounds = array<i64: 8, 32>}, {pipeline_mode = #tpu.pipeline_mode<synchronous>, transform_indices = @transform_1, window_bounds = array<i64: 32, 128>}, {pipeline_mode = #tpu.pipeline_mode<synchronous>, transform_indices = @transform_2, window_bounds = array<i64: 128, 128>}, {pipeline_mode = #tpu.pipeline_mode<synchronous>, transform_indices = @transform_3, window_bounds = array<i64: 128, 128>}, {pipeline_mode = #tpu.pipeline_mode<synchronous>, transform_indices = @transform_4, window_bounds = array<i64: 1, 128>}, {pipeline_mode = #tpu.pipeline_mode<synchronous>, transform_indices = @transform_5, window_bounds = array<i64: 1, 128>}, {pipeline_mode = #tpu.pipeline_mode<synchronous>, transform_indices = @transform_6, window_bounds = array<i64: 1, 128>}, {transform_indices = @transform_7, window_bounds = array<i64: 8, 128>}]} {
    %c0 = arith.constant 0 : index
    %c0_0 = arith.constant 0 : index
    %0 = vector.load %arg1[%c0, %c0_0] : memref<8x32xf32, #tpu.memory_space<vmem>>, vector<8x32xf32>
    %1 = arith.truncf %0 : vector<8x32xf32> to vector<8x32xbf16>
    %c0_1 = arith.constant 0 : index
    %c0_2 = arith.constant 0 : index
    %2 = vector.load %arg2[%c0_1, %c0_2] : memref<32x128xbf16, #tpu.memory_space<vmem>>, vector<32x128xbf16>
    %cst = arith.constant dense<0.000000e+00> : vector<8x128xf32>
    %3 = tpu.matmul %1, %2, %cst {dimension_numbers = #tpu.dot_dimension_numbers<[1], [0], [0], [1], [0, 0, 1, 1], [], []>} : vector<8x32xbf16>, vector<32x128xbf16>, vector<8x128xf32> -> vector<8x128xf32>
    %c0_3 = arith.constant 0 : index
    %c0_4 = arith.constant 0 : index
    %4 = vector.load %arg5[%c0_3, %c0_4] : memref<1x128xf32, #tpu.memory_space<vmem>>, vector<1x128xf32>
    %5 = vector.broadcast %4 : vector<1x128xf32> to vector<8x128xf32>
    %6 = arith.addf %3, %5 : vector<8x128xf32>
    %cst_5 = arith.constant 0.000000e+00 : f32
    %7 = vector.broadcast %cst_5 : f32 to vector<8x128xf32>
    %8 = arith.maximumf %6, %7 : vector<8x128xf32>
    %9 = arith.truncf %8 : vector<8x128xf32> to vector<8x128xbf16>
    %c0_6 = arith.constant 0 : index
    %c0_7 = arith.constant 0 : index
    %10 = vector.load %arg3[%c0_6, %c0_7] : memref<128x128xbf16, #tpu.memory_space<vmem>>, vector<128x128xbf16>
    %cst_8 = arith.constant dense<0.000000e+00> : vector<8x128xf32>
    %11 = tpu.matmul %9, %10, %cst_8 {dimension_numbers = #tpu.dot_dimension_numbers<[1], [0], [0], [1], [0, 0, 1, 1], [], []>} : vector<8x128xbf16>, vector<128x128xbf16>, vector<8x128xf32> -> vector<8x128xf32>
    %c0_9 = arith.constant 0 : index
    %c0_10 = arith.constant 0 : index
    %12 = vector.load %arg6[%c0_9, %c0_10] : memref<1x128xf32, #tpu.memory_space<vmem>>, vector<1x128xf32>
    %13 = vector.broadcast %12 : vector<1x128xf32> to vector<8x128xf32>
    %14 = arith.addf %11, %13 : vector<8x128xf32>
    %cst_11 = arith.constant 0.000000e+00 : f32
    %15 = vector.broadcast %cst_11 : f32 to vector<8x128xf32>
    %16 = arith.maximumf %14, %15 : vector<8x128xf32>
    %17 = arith.truncf %16 : vector<8x128xf32> to vector<8x128xbf16>
    %c0_12 = arith.constant 0 : index
    %c0_13 = arith.constant 0 : index
    %18 = vector.load %arg4[%c0_12, %c0_13] : memref<128x128xbf16, #tpu.memory_space<vmem>>, vector<128x128xbf16>
    %cst_14 = arith.constant dense<0.000000e+00> : vector<8x128xf32>
    %19 = tpu.matmul %17, %18, %cst_14 {dimension_numbers = #tpu.dot_dimension_numbers<[1], [0], [0], [1], [0, 0, 1, 1], [], []>} : vector<8x128xbf16>, vector<128x128xbf16>, vector<8x128xf32> -> vector<8x128xf32>
    %c0_15 = arith.constant 0 : index
    %c0_16 = arith.constant 0 : index
    %20 = vector.load %arg7[%c0_15, %c0_16] : memref<1x128xf32, #tpu.memory_space<vmem>>, vector<1x128xf32>
    %21 = vector.broadcast %20 : vector<1x128xf32> to vector<8x128xf32>
    %22 = arith.addf %19, %21 : vector<8x128xf32>
    %23 = arith.negf %22 : vector<8x128xf32>
    %24 = math.exp %23 : vector<8x128xf32>
    %cst_17 = arith.constant 1.000000e+00 : f32
    %25 = vector.broadcast %cst_17 : f32 to vector<8x128xf32>
    %26 = arith.addf %25, %24 : vector<8x128xf32>
    %27 = arith.divf %25, %26 : vector<8x128xf32>
    %c0_18 = arith.constant 0 : index
    %c0_19 = arith.constant 0 : index
    %28 = vector.load %arg8[%c0_18, %c0_19] : memref<8x128xf32, #tpu.memory_space<vmem>>, vector<8x128xf32>
    tpu.vector_store %arg8[%c0_18, %c0_19], %27 {strides = array<i32>} : memref<8x128xf32, #tpu.memory_space<vmem>>, vector<8x128xf32>,
    return
  }
  func.func @transform_0(%arg0: i32) -> (i32, i32) {
    %c0_i32 = arith.constant 0 : i32
    %c0_i32_0 = arith.constant 0 : i32
    return %arg0, %c0_i32 : i32, i32
  }
  func.func @transform_1(%arg0: i32) -> (i32, i32) {
    %c0_i32 = arith.constant 0 : i32
    %c0_i32_0 = arith.constant 0 : i32
    %c0_i32_1 = arith.constant 0 : i32
    return %c0_i32, %c0_i32_0 : i32, i32
  }
  func.func @transform_2(%arg0: i32) -> (i32, i32) {
    %c0_i32 = arith.constant 0 : i32
    %c0_i32_0 = arith.constant 0 : i32
    %c0_i32_1 = arith.constant 0 : i32
    return %c0_i32, %c0_i32_0 : i32, i32
  }
  func.func @transform_3(%arg0: i32) -> (i32, i32) {
    %c0_i32 = arith.constant 0 : i32
    %c0_i32_0 = arith.constant 0 : i32
    %c0_i32_1 = arith.constant 0 : i32
    return %c0_i32, %c0_i32_0 : i32, i32
  }
  func.func @transform_4(%arg0: i32) -> (i32, i32) {
    %c0_i32 = arith.constant 0 : i32
    %c0_i32_0 = arith.constant 0 : i32
    %c0_i32_1 = arith.constant 0 : i32
    return %c0_i32, %c0_i32_0 : i32, i32
  }
  func.func @transform_5(%arg0: i32) -> (i32, i32) {
    %c0_i32 = arith.constant 0 : i32
    %c0_i32_0 = arith.constant 0 : i32
    %c0_i32_1 = arith.constant 0 : i32
    return %c0_i32, %c0_i32_0 : i32, i32
  }
  func.func @transform_6(%arg0: i32) -> (i32, i32) {
    %c0_i32 = arith.constant 0 : i32
    %c0_i32_0 = arith.constant 0 : i32
    %c0_i32_1 = arith.constant 0 : i32
    return %c0_i32, %c0_i32_0 : i32, i32
  }
  func.func @transform_7(%arg0: i32) -> (i32, i32) {
    %c0_i32 = arith.constant 0 : i32
    %c0_i32_0 = arith.constant 0 : i32
    return %arg0, %c0_i32 : i32, i32
  }
}

</mosaic_0001>

<llo_original>
// kernel: tpu_custom_call.1
$region0: #{tpu_custom_call.1}
  #allocation0 [shape = 'u32[]', space=smem, size = 0x4, offset = 0x4, fixed_abs, tag = 'smem constant byte address 0x4 - core index']
  #allocation1 [shape = 'u32[144,128]{1,0:T(1,128)}', space=vmem, size = 0x12000, scoped, tag = 'internal scratch']
  %s0 = inlined_call_operand.hbm [shape: f32[8,32], index: 0, kind: input, shape index: {}]
  %s1 = inlined_call_operand.hbm [shape: bf16[32,128], index: 1, kind: input, shape index: {}]
  %s2 = inlined_call_operand.hbm [shape: bf16[128,128], index: 2, kind: input, shape index: {}]
  %s3 = inlined_call_operand.hbm [shape: bf16[128,128], index: 3, kind: input, shape index: {}]
  %s4 = inlined_call_operand.hbm [shape: f32[1,128], index: 4, kind: input, shape index: {}]
  %s5 = inlined_call_operand.hbm [shape: f32[1,128], index: 5, kind: input, shape index: {}]
  %s6 = inlined_call_operand.hbm [shape: f32[1,128], index: 6, kind: input, shape index: {}]
  %s7 = inlined_call_operand.hbm [shape: f32[8,128], index: 7, kind: output, shape index: {}]
  %s8 = sld [smem:[#allocation0]]
  $region66: #{tpu_custom_call.1} parent=0
    _
  %s10 = ssub.s32 1, %s8
  %s11 = scalar_select 0, %s10, %s8
  $region1: #{tpu_custom_call.1} parent=0
    #allocation2 [shape = 'u8[4096]{0}', space=vmem, size = 0x1000, scoped, tag = 'input window, operand 0, single buffered']
    #allocation3 [shape = 's32[1]{0}', space=sflag, size = 0x4, scoped, tag = 'scoped memory for tpu_custom_call.1']
    #allocation4 [shape = 's32[1]{0}', space=sflag, size = 0x4, scoped, tag = 'scoped memory for tpu_custom_call.1']
    #allocation5 [shape = 'u8[8192]{0}', space=vmem, size = 0x2000, scoped, tag = 'input window, operand 1, single buffered']
    #allocation6 [shape = 's32[1]{0}', space=sflag, size = 0x4, scoped, tag = 'scoped memory for tpu_custom_call.1']
    #allocation7 [shape = 'u8[32768]{0}', space=vmem, size = 0x8000, scoped, tag = 'input window, operand 2, single buffered']
    #allocation8 [shape = 'u8[32768]{0}', space=vmem, size = 0x8000, scoped, tag = 'input window, operand 3, single buffered']
    #allocation9 [shape = 's32[1]{0}', space=sflag, size = 0x4, scoped, tag = 'scoped memory for tpu_custom_call.1']
    #allocation10 [shape = 'u8[512]{0}', space=vmem, size = 0x400, scoped, tag = 'input window, operand 4, single buffered']
    #allocation11 [shape = 'u8[512]{0}', space=vmem, size = 0x400, scoped, tag = 'input window, operand 5, single buffered']
    #allocation12 [shape = 's32[1]{0}', space=sflag, size = 0x4, scoped, tag = 'scoped memory for tpu_custom_call.1']
    #allocation13 [shape = 'u8[512]{0}', space=vmem, size = 0x400, scoped, tag = 'input window, operand 6, single buffered']
    #allocation14 [shape = 'u8[4096]{0}', space=vmem, size = 0x1000, scoped, tag = 'output window, operand 0, single buffered']
    %12 = vsyncpa [#allocation3], 0
    %13 = vsyncpa [#allocation6], 0
    %14 = vsyncpa [#allocation9], 0
    %15 = vsyncpa [#allocation12], 0
    %16 = vsyncpa [#allocation4], 0
    // Predicated region
    $region2: #{tpu_custom_call.1} parent=1 // pred_check
      _
    $region3: #{tpu_custom_call.1} parent=1 // pred_check_branch
      %18 = sbr.rel (0) target = $region5
    $region4: #{tpu_custom_call.1} parent=1 // pred_region
      %s20 = ssub.s32 128, 128
      %21 = vsyncadd [#allocation3], %s20
      %s23 = sshll.u32 [#allocation2], 4
      %s24 = int_to_ptr.vmem [resolvable:$true] %s23
      %26 = dma.hbm_to_vmem [thread:$0]  %s0, 128, %s24, [#allocation3]
    $region5: #{tpu_custom_call.1} parent=1 // pred_fallthru
      _
    // Predicated region
    $region6: #{tpu_custom_call.1} parent=1 // pred_check
      _
    $region7: #{tpu_custom_call.1} parent=1 // pred_check_branch
      %28 = sbr.rel (0) target = $region9
    $region8: #{tpu_custom_call.1} parent=1 // pred_region
      %s30 = ssub.s32 256, 256
      %31 = vsyncadd [#allocation6], %s30
      %s32 = sshll.u32 [#allocation5], 4
      %s33 = int_to_ptr.vmem [resolvable:$true] %s32
      %38 = dma.hbm_to_vmem [thread:$0]  %s1, 256, %s33, [#allocation6], 64, 64, 4
    $region9: #{tpu_custom_call.1} parent=1 // pred_fallthru
      _
    // Predicated region
    $region10: #{tpu_custom_call.1} parent=1 // pred_check
      _
    $region11: #{tpu_custom_call.1} parent=1 // pred_check_branch
      %40 = sbr.rel (0) target = $region13
    $region12: #{tpu_custom_call.1} parent=1 // pred_region
      %s42 = ssub.s32 1024, 1024
      %43 = vsyncadd [#allocation6], %s42
      %s44 = sshll.u32 [#allocation7], 4
      %s45 = int_to_ptr.vmem [resolvable:$true] %s44
      %50 = dma.hbm_to_vmem [thread:$0]  %s2, 1024, %s45, [#allocation6], 64, 64, 4
    $region13: #{tpu_custom_call.1} parent=1 // pred_fallthru
      _
    // Predicated region
    $region14: #{tpu_custom_call.1} parent=1 // pred_check
      _
    $region15: #{tpu_custom_call.1} parent=1 // pred_check_branch
      %52 = sbr.rel (0) target = $region17
    $region16: #{tpu_custom_call.1} parent=1 // pred_region
      %s54 = ssub.s32 1024, 1024
      %55 = vsyncadd [#allocation9], %s54
      %s56 = sshll.u32 [#allocation8], 4
      %s57 = int_to_ptr.vmem [resolvable:$true] %s56
      %62 = dma.hbm_to_vmem [thread:$0]  %s3, 1024, %s57, [#allocation9], 64, 64, 4
    $region17: #{tpu_custom_call.1} parent=1 // pred_fallthru
      _
    // Predicated region
    $region18: #{tpu_custom_call.1} parent=1 // pred_check
      _
    $region19: #{tpu_custom_call.1} parent=1 // pred_check_branch
      %64 = sbr.rel (0) target = $region21
    $region20: #{tpu_custom_call.1} parent=1 // pred_region
      %s66 = ssub.s32 16, 16
      %67 = vsyncadd [#allocation9], %s66
      %s69 = sshll.u32 [#allocation10], 4
      %s70 = int_to_ptr.vmem [resolvable:$true] %s69
      %72 = dma.hbm_to_vmem [thread:$0]  %s4, 16, %s70, [#allocation9]
    $region21: #{tpu_custom_call.1} parent=1 // pred_fallthru
      _
    // Predicated region
    $region22: #{tpu_custom_call.1} parent=1 // pred_check
      _
    $region23: #{tpu_custom_call.1} parent=1 // pred_check_branch
      %74 = sbr.rel (0) target = $region25
    $region24: #{tpu_custom_call.1} parent=1 // pred_region
      %s76 = ssub.s32 16, 16
      %77 = vsyncadd [#allocation12], %s76
      %s79 = sshll.u32 [#allocation11], 4
      %s80 = int_to_ptr.vmem [resolvable:$true] %s79
      %82 = dma.hbm_to_vmem [thread:$0]  %s5, 16, %s80, [#allocation12]
    $region25: #{tpu_custom_call.1} parent=1 // pred_fallthru
      _
    // Predicated region
    $region26: #{tpu_custom_call.1} parent=1 // pred_check
      _
    $region27: #{tpu_custom_call.1} parent=1 // pred_check_branch
      %84 = sbr.rel (0) target = $region29
    $region28: #{tpu_custom_call.1} parent=1 // pred_region
      %s86 = ssub.s32 16, 16
      %87 = vsyncadd [#allocation12], %s86
      %s89 = sshll.u32 [#allocation13], 4
      %s90 = int_to_ptr.vmem [resolvable:$true] %s89
      %92 = dma.hbm_to_vmem [thread:$0]  %s6, 16, %s90, [#allocation12]
    $region29: #{tpu_custom_call.1} parent=1 // pred_fallthru
      _
    // Predicated region
    $region30: #{tpu_custom_call.1} parent=1 // pred_check
      _
    $region31: #{tpu_custom_call.1} parent=1 // pred_check_branch
      %94 = sbr.rel (0) target = $region33
    $region32: #{tpu_custom_call.1} parent=1 // pred_region
      %95 = dma.done [#allocation3], 128
    $region33: #{tpu_custom_call.1} parent=1 // pred_fallthru
      _
    // Predicated region
    $region34: #{tpu_custom_call.1} parent=1 // pred_check
      _
    $region35: #{tpu_custom_call.1} parent=1 // pred_check_branch
      %97 = sbr.rel (0) target = $region37
    $region36: #{tpu_custom_call.1} parent=1 // pred_region
      %98 = dma.done [#allocation6], 256
    $region37: #{tpu_custom_call.1} parent=1 // pred_fallthru
      _
    // Predicated region
    $region38: #{tpu_custom_call.1} parent=1 // pred_check
      _
    $region39: #{tpu_custom_call.1} parent=1 // pred_check_branch
      %100 = sbr.rel (0) target = $region41
    $region40: #{tpu_custom_call.1} parent=1 // pred_region
      %101 = dma.done [#allocation6], 1024
    $region41: #{tpu_custom_call.1} parent=1 // pred_fallthru
      _
    // Predicated region
    $region42: #{tpu_custom_call.1} parent=1 // pred_check
      _
    $region43: #{tpu_custom_call.1} parent=1 // pred_check_branch
      %103 = sbr.rel (0) target = $region45
    $region44: #{tpu_custom_call.1} parent=1 // pred_region
      %104 = dma.done [#allocation9], 1024
    $region45: #{tpu_custom_call.1} parent=1 // pred_fallthru
      _
    // Predicated region
    $region46: #{tpu_custom_call.1} parent=1 // pred_check
      _
    $region47: #{tpu_custom_call.1} parent=1 // pred_check_branch
      %106 = sbr.rel (0) target = $region49
    $region48: #{tpu_custom_call.1} parent=1 // pred_region
      %107 = dma.done [#allocation9], 16
    $region49: #{tpu_custom_call.1} parent=1 // pred_fallthru
      _
    // Predicated region
    $region50: #{tpu_custom_call.1} parent=1 // pred_check
      _
    $region51: #{tpu_custom_call.1} parent=1 // pred_check_branch
      %109 = sbr.rel (0) target = $region53
    $region52: #{tpu_custom_call.1} parent=1 // pred_region
      %110 = dma.done [#allocation12], 16
    $region53: #{tpu_custom_call.1} parent=1 // pred_fallthru
      _
    // Predicated region
    $region54: #{tpu_custom_call.1} parent=1 // pred_check
      _
    $region55: #{tpu_custom_call.1} parent=1 // pred_check_branch
      %112 = sbr.rel (0) target = $region57
    $region56: #{tpu_custom_call.1} parent=1 // pred_region
      %113 = dma.done [#allocation12], 16
    $region57: #{tpu_custom_call.1} parent=1 // pred_fallthru
      _
    %v115 = vld [vmem:[#allocation2] sm:$0xff]
    %v116 = vpack.c.bf16 %v115, %v115
    %v117 = vld [vmem:[#allocation5] sm:$0xf]
    %v118 = vld [vmem:[#allocation5 + $0x4] sm:$0xf]
    %v119 = vld [vmem:[#allocation5 + $0x8] sm:$0xf]
    %v120 = vld [vmem:[#allocation5 + $0xc] sm:$0xf]
    %v121 = vld [vmem:[#allocation10] sm:$0x1]
    %v123 = vlaneseq
    %v124 = vshrl.u32 %v123, 7
    %v125 = vsub.s32 0, %v124
    %v126 = vrot.slane %v121, %v125
    %v132 = vunpack.c.l.b16 %v117
    %v133 = vunpack.c.l.b16 %v118
    %v134 = vunpack.c.l.b16 %v119
    %v135 = vunpack.c.l.b16 %v120
    %v136 = vpack.c.b16 %v133, %v132
    %v137 = vpack.c.b16 %v135, %v134
    %vm140 = vcmask 261120
    %v142 = vsel %vm140, %v116, 0
    %144 = vmatprep.subr.bf16.mxu0 0
    %145 = vmatpush1.bf16.msra.mxu0 %v136
    %146 = vmatprep.subr.bf16.mxu0 0
    %147 = vmatpush1.bf16.msra.mxu0 %v137
    %148 = vmatprep.subr.bf16.mxu0 0
    %149 = vmatpush1.bf16.msra.mxu0 0
    %150 = vmatprep.subr.bf16.mxu0 0
    %151 = vmatpush1.bf16.msra.mxu0 0
    %152 = vmatprep.subr.bf16.mxu0 0
    %153 = vmatpush1.bf16.msra.mxu0 0
    %154 = vmatprep.subr.bf16.mxu0 0
    %155 = vmatpush1.bf16.msra.mxu0 0
    %156 = vmatprep.subr.bf16.mxu0 0
    %157 = vmatpush1.bf16.msra.mxu0 0
    %158 = vmatprep.subr.bf16.mxu0 0
    %159 = vmatpush1.bf16.msra.mxu0 0
    %160 = vmatprep.subr.bf16.mxu0 0
    %161 = vmatpush1.bf16.msra.mxu0 0
    %162 = vmatprep.subr.bf16.mxu0 0
    %163 = vmatpush1.bf16.msra.mxu0 0
    %164 = vmatprep.subr.bf16.mxu0 0
    %165 = vmatpush1.bf16.msra.mxu0 0
    %166 = vmatprep.subr.bf16.mxu0 0
    %167 = vmatpush1.bf16.msra.mxu0 0
    %168 = vmatprep.subr.bf16.mxu0 0
    %169 = vmatpush1.bf16.msra.mxu0 0
    %170 = vmatprep.subr.bf16.mxu0 0
    %171 = vmatpush1.bf16.msra.mxu0 0
    %172 = vmatprep.subr.bf16.mxu0 0
    %173 = vmatpush1.bf16.msra.mxu0 0
    %174 = vmatprep.subr.bf16.mxu0 0
    %175 = vmatpush1.bf16.msra.mxu0 0
    %176 = vmatprep.mubr.bf16.mxu0 0
    %177 = vmatmul.mubr.bf16.gmra.mrb[0].mxu0 %v142
    %v178 = vpop.f32.mrb[0].mxu0
    %v179 = vadd.f32 %v126, %v178
    %v180 = vpop.f32.mrb[0].mxu0
    %v181 = vpop.f32.mrb[0].mxu0
    %v182 = vpop.f32.mrb[0].mxu0
    %183 = vdwg.mxu0
    %v184 = vmax.f32 %v179, 0.0
    %v185 = vpack.c.bf16 %v184, %v184
    %v186 = vld [vmem:[#allocation7] sm:$0xf]
    %v187 = vld [vmem:[#allocation7 + $0x4] sm:$0xf]
    %v188 = vld [vmem:[#allocation7 + $0x8] sm:$0xf]
    %v189 = vld [vmem:[#allocation7 + $0xc] sm:$0xf]
    %v190 = vld [vmem:[#allocation7 + $0x10] sm:$0xf]
    %v191 = vld [vmem:[#allocation7 + $0x14] sm:$0xf]
    %v192 = vld [vmem:[#allocation7 + $0x18] sm:$0xf]
    %v193 = vld [vmem:[#allocation7 + $0x1c] sm:$0xf]
    %v194 = vld [vmem:[#allocation7 + $0x20] sm:$0xf]
    %v195 = vld [vmem:[#allocation7 + $0x24] sm:$0xf]
    %v196 = vld [vmem:[#allocation7 + $0x28] sm:$0xf]
    %v197 = vld [vmem:[#allocation7 + $0x2c] sm:$0xf]
    %v198 = vld [vmem:[#allocation7 + $0x30] sm:$0xf]
    %v199 = vld [vmem:[#allocation7 + $0x34] sm:$0xf]
    %v200 = vld [vmem:[#allocation7 + $0x38] sm:$0xf]
    %v201 = vld [vmem:[#allocation7 + $0x3c] sm:$0xf]
    %v202 = vld [vmem:[#allocation11] sm:$0x1]
    %v204 = vlaneseq
    %v205 = vshrl.u32 %v204, 7
    %v206 = vsub.s32 0, %v205
    %v207 = vrot.slane %v202, %v206
    %v225 = vunpack.c.l.b16 %v186
    %v226 = vunpack.c.l.b16 %v187
    %v227 = vunpack.c.l.b16 %v188
    %v228 = vunpack.c.l.b16 %v189
    %v229 = vunpack.c.l.b16 %v190
    %v230 = vunpack.c.l.b16 %v191
    %v231 = vunpack.c.l.b16 %v192
    %v232 = vunpack.c.l.b16 %v193
    %v233 = vunpack.c.l.b16 %v194
    %v234 = vunpack.c.l.b16 %v195
    %v235 = vunpack.c.l.b16 %v196
    %v236 = vunpack.c.l.b16 %v197
    %v237 = vunpack.c.l.b16 %v198
    %v238 = vunpack.c.l.b16 %v199
    %v239 = vunpack.c.l.b16 %v200
    %v240 = vunpack.c.l.b16 %v201
    %v241 = vpack.c.b16 %v226, %v225
    %v242 = vpack.c.b16 %v228, %v227
    %v243 = vpack.c.b16 %v230, %v229
    %v244 = vpack.c.b16 %v232, %v231
    %v245 = vpack.c.b16 %v234, %v233
    %v246 = vpack.c.b16 %v236, %v235
    %v247 = vpack.c.b16 %v238, %v237
    %v248 = vpack.c.b16 %v240, %v239
    %257 = vmatprep.subr.bf16.mxu0 0
    %258 = vmatpush1.bf16.msra.mxu0 %v241
    %259 = vmatprep.subr.bf16.mxu0 0
    %260 = vmatpush1.bf16.msra.mxu0 %v242
    %261 = vmatprep.subr.bf16.mxu0 0
    %262 = vmatpush1.bf16.msra.mxu0 %v243
    %263 = vmatprep.subr.bf16.mxu0 0
    %264 = vmatpush1.bf16.msra.mxu0 %v244
    %265 = vmatprep.subr.bf16.mxu0 0
    %266 = vmatpush1.bf16.msra.mxu0 %v245
    %267 = vmatprep.subr.bf16.mxu0 0
    %268 = vmatpush1.bf16.msra.mxu0 %v246
    %269 = vmatprep.subr.bf16.mxu0 0
    %270 = vmatpush1.bf16.msra.mxu0 %v247
    %271 = vmatprep.subr.bf16.mxu0 0
    %272 = vmatpush1.bf16.msra.mxu0 %v248
    %273 = vmatprep.subr.bf16.mxu0 0
    %274 = vmatpush1.bf16.msra.mxu0 0
    %275 = vmatprep.subr.bf16.mxu0 0
    %276 = vmatpush1.bf16.msra.mxu0 0
    %277 = vmatprep.subr.bf16.mxu0 0
    %278 = vmatpush1.bf16.msra.mxu0 0
    %279 = vmatprep.subr.bf16.mxu0 0
    %280 = vmatpush1.bf16.msra.mxu0 0
    %281 = vmatprep.subr.bf16.mxu0 0
    %282 = vmatpush1.bf16.msra.mxu0 0
    %283 = vmatprep.subr.bf16.mxu0 0
    %284 = vmatpush1.bf16.msra.mxu0 0
    %285 = vmatprep.subr.bf16.mxu0 0
    %286 = vmatpush1.bf16.msra.mxu0 0
    %287 = vmatprep.subr.bf16.mxu0 0
    %288 = vmatpush1.bf16.msra.mxu0 0
    %289 = vmatprep.mubr.bf16.mxu0 0
    %290 = vmatmul.mubr.bf16.gmra.mrb[0].mxu0 %v185
    %v291 = vpop.f32.mrb[0].mxu0
    %v292 = vadd.f32 %v207, %v291
    %v293 = vpop.f32.mrb[0].mxu0
    %v294 = vpop.f32.mrb[0].mxu0
    %v295 = vpop.f32.mrb[0].mxu0
    %296 = vdwg.mxu0
    %v297 = vmax.f32 %v292, 0.0
    %v298 = vpack.c.bf16 %v297, %v297
    %v299 = vld [vmem:[#allocation8] sm:$0xf]
    %v300 = vld [vmem:[#allocation8 + $0x4] sm:$0xf]
    %v301 = vld [vmem:[#allocation8 + $0x8] sm:$0xf]
    %v302 = vld [vmem:[#allocation8 + $0xc] sm:$0xf]
    %v303 = vld [vmem:[#allocation8 + $0x10] sm:$0xf]
    %v304 = vld [vmem:[#allocation8 + $0x14] sm:$0xf]
    %v305 = vld [vmem:[#allocation8 + $0x18] sm:$0xf]
    %v306 = vld [vmem:[#allocation8 + $0x1c] sm:$0xf]
    %v307 = vld [vmem:[#allocation8 + $0x20] sm:$0xf]
    %v308 = vld [vmem:[#allocation8 + $0x24] sm:$0xf]
    %v309 = vld [vmem:[#allocation8 + $0x28] sm:$0xf]
    %v310 = vld [vmem:[#allocation8 + $0x2c] sm:$0xf]
    %v311 = vld [vmem:[#allocation8 + $0x30] sm:$0xf]
    %v312 = vld [vmem:[#allocation8 + $0x34] sm:$0xf]
    %v313 = vld [vmem:[#allocation8 + $0x38] sm:$0xf]
    %v314 = vld [vmem:[#allocation8 + $0x3c] sm:$0xf]
    %v315 = vld [vmem:[#allocation13] sm:$0x1]
    %v317 = vlaneseq
    %v318 = vshrl.u32 %v317, 7
    %v319 = vsub.s32 0, %v318
    %v320 = vrot.slane %v315, %v319
    %v338 = vunpack.c.l.b16 %v299
    %v339 = vunpack.c.l.b16 %v300
    %v340 = vunpack.c.l.b16 %v301
    %v341 = vunpack.c.l.b16 %v302
    %v342 = vunpack.c.l.b16 %v303
    %v343 = vunpack.c.l.b16 %v304
    %v344 = vunpack.c.l.b16 %v305
    %v345 = vunpack.c.l.b16 %v306
    %v346 = vunpack.c.l.b16 %v307
    %v347 = vunpack.c.l.b16 %v308
    %v348 = vunpack.c.l.b16 %v309
    %v349 = vunpack.c.l.b16 %v310
    %v350 = vunpack.c.l.b16 %v311
    %v351 = vunpack.c.l.b16 %v312
    %v352 = vunpack.c.l.b16 %v313
    %v353 = vunpack.c.l.b16 %v314
    %v354 = vpack.c.b16 %v339, %v338
    %v355 = vpack.c.b16 %v341, %v340
    %v356 = vpack.c.b16 %v343, %v342
    %v357 = vpack.c.b16 %v345, %v344
    %v358 = vpack.c.b16 %v347, %v346
    %v359 = vpack.c.b16 %v349, %v348
    %v360 = vpack.c.b16 %v351, %v350
    %v361 = vpack.c.b16 %v353, %v352
    %370 = vmatprep.subr.bf16.mxu0 0
    %371 = vmatpush1.bf16.msra.mxu0 %v354
    %372 = vmatprep.subr.bf16.mxu0 0
    %373 = vmatpush1.bf16.msra.mxu0 %v355
    %374 = vmatprep.subr.bf16.mxu0 0
    %375 = vmatpush1.bf16.msra.mxu0 %v356
    %376 = vmatprep.subr.bf16.mxu0 0
    %377 = vmatpush1.bf16.msra.mxu0 %v357
    %378 = vmatprep.subr.bf16.mxu0 0
    %379 = vmatpush1.bf16.msra.mxu0 %v358
    %380 = vmatprep.subr.bf16.mxu0 0
    %381 = vmatpush1.bf16.msra.mxu0 %v359
    %382 = vmatprep.subr.bf16.mxu0 0
    %383 = vmatpush1.bf16.msra.mxu0 %v360
    %384 = vmatprep.subr.bf16.mxu0 0
    %385 = vmatpush1.bf16.msra.mxu0 %v361
    %386 = vmatprep.subr.bf16.mxu0 0
    %387 = vmatpush1.bf16.msra.mxu0 0
    %388 = vmatprep.subr.bf16.mxu0 0
    %389 = vmatpush1.bf16.msra.mxu0 0
    %390 = vmatprep.subr.bf16.mxu0 0
    %391 = vmatpush1.bf16.msra.mxu0 0
    %392 = vmatprep.subr.bf16.mxu0 0
    %393 = vmatpush1.bf16.msra.mxu0 0
    %394 = vmatprep.subr.bf16.mxu0 0
    %395 = vmatpush1.bf16.msra.mxu0 0
    %396 = vmatprep.subr.bf16.mxu0 0
    %397 = vmatpush1.bf16.msra.mxu0 0
    %398 = vmatprep.subr.bf16.mxu0 0
    %399 = vmatpush1.bf16.msra.mxu0 0
    %400 = vmatprep.subr.bf16.mxu0 0
    %401 = vmatpush1.bf16.msra.mxu0 0
    %402 = vmatprep.mubr.bf16.mxu0 0
    %403 = vmatmul.mubr.bf16.gmra.mrb[0].mxu0 %v298
    %v404 = vpop.f32.mrb[0].mxu0
    %v405 = vadd.f32 %v320, %v404
    %v406 = vpop.f32.mrb[0].mxu0
    %v407 = vpop.f32.mrb[0].mxu0
    %v408 = vpop.f32.mrb[0].mxu0
    %409 = vdwg.mxu0
    %v410 = vxor.u32 %v405, 2147483648
    %v411 = vmul.f32 %v410, 1.442695
    %v412 = vpow.pop %v411
    %v413 = vadd.f32 %v412, 1.0
    %v414 = vrcp.pop %v413
    %v415 = vmul.f32 1.0, %v414
    %416 = vst [vmem:[#allocation14] sm:$0xff] %v415
    // Predicated region
    $region58: #{tpu_custom_call.1} parent=1 // pred_check
      _
    $region59: #{tpu_custom_call.1} parent=1 // pred_check_branch
      %418 = sbr.rel (0) target = $region61
    $region60: #{tpu_custom_call.1} parent=1 // pred_region
      %s420 = ssub.s32 128, 128
      %421 = vsyncadd [#allocation4], %s420
      %s423 = sshll.u32 [#allocation14], 4
      %s424 = int_to_ptr.vmem [resolvable:$true] %s423
      %426 = dma.vmem_to_hbm [thread:$0]  %s424, 128, %s7, [#allocation4]
    $region61: #{tpu_custom_call.1} parent=1 // pred_fallthru
      _
    // Predicated region
    $region62: #{tpu_custom_call.1} parent=1 // pred_check
      _
    $region63: #{tpu_custom_call.1} parent=1 // pred_check_branch
      %428 = sbr.rel (0) target = $region65
    $region64: #{tpu_custom_call.1} parent=1 // pred_region
      %429 = dma.done [#allocation4], 128
    $region65: #{tpu_custom_call.1} parent=1 // pred_fallthru
      _
    %430 = vsyncpa [#allocation3], 1
    %431 = vsyncpa [#allocation6], 1
    %432 = vsyncpa [#allocation9], 1
    %433 = vsyncpa [#allocation12], 1
    %434 = vsyncpa [#allocation4], 1

// kernel: tpu_custom_call.1
$region0: #{tpu_custom_call.1}
  #allocation0 [shape = 'u32[]', space=smem, size = 0x4, offset = 0x4, fixed_abs, tag = 'smem constant byte address 0x4 - core index']
  #allocation1 [shape = 'u32[144,128]{1,0:T(1,128)}', space=vmem, size = 0x12000, scoped, tag = 'internal scratch']
  %s0 = inlined_call_operand.hbm [shape: f32[8,32], index: 0, kind: input, shape index: {}]
  %s1 = inlined_call_operand.hbm [shape: bf16[32,128], index: 1, kind: input, shape index: {}]
  %s2 = inlined_call_operand.hbm [shape: bf16[128,128], index: 2, kind: input, shape index: {}]
  %s3 = inlined_call_operand.hbm [shape: bf16[128,128], index: 3, kind: input, shape index: {}]
  %s4 = inlined_call_operand.hbm [shape: f32[1,128], index: 4, kind: input, shape index: {}]
  %s5 = inlined_call_operand.hbm [shape: f32[1,128], index: 5, kind: input, shape index: {}]
  %s6 = inlined_call_operand.hbm [shape: f32[1,128], index: 6, kind: input, shape index: {}]
  %s7 = inlined_call_operand.hbm [shape: f32[8,128], index: 7, kind: output, shape index: {}]
  %s8 = sld [smem:[#allocation0]]
  $region66: #{tpu_custom_call.1} parent=0
    _
  %s10 = ssub.s32 1, %s8
  %s11 = scalar_select 0, %s10, %s8
  $region1: #{tpu_custom_call.1} parent=0
    #allocation2 [shape = 'u8[4096]{0}', space=vmem, size = 0x1000, scoped, tag = 'input window, operand 0, single buffered']
    #allocation3 [shape = 's32[1]{0}', space=sflag, size = 0x4, scoped, tag = 'scoped memory for tpu_custom_call.1']
    #allocation4 [shape = 's32[1]{0}', space=sflag, size = 0x4, scoped, tag = 'scoped memory for tpu_custom_call.1']
    #allocation5 [shape = 'u8[8192]{0}', space=vmem, size = 0x2000, scoped, tag = 'input window, operand 1, single buffered']
    #allocation6 [shape = 's32[1]{0}', space=sflag, size = 0x4, scoped, tag = 'scoped memory for tpu_custom_call.1']
    #allocation7 [shape = 'u8[32768]{0}', space=vmem, size = 0x8000, scoped, tag = 'input window, operand 2, single buffered']
    #allocation8 [shape = 'u8[32768]{0}', space=vmem, size = 0x8000, scoped, tag = 'input window, operand 3, single buffered']
    #allocation9 [shape = 's32[1]{0}', space=sflag, size = 0x4, scoped, tag = 'scoped memory for tpu_custom_call.1']
    #allocation10 [shape = 'u8[512]{0}', space=vmem, size = 0x400, scoped, tag = 'input window, operand 4, single buffered']
    #allocation11 [shape = 'u8[512]{0}', space=vmem, size = 0x400, scoped, tag = 'input window, operand 5, single buffered']
    #allocation12 [shape = 's32[1]{0}', space=sflag, size = 0x4, scoped, tag = 'scoped memory for tpu_custom_call.1']
    #allocation13 [shape = 'u8[512]{0}', space=vmem, size = 0x400, scoped, tag = 'input window, operand 6, single buffered']
    #allocation14 [shape = 'u8[4096]{0}', space=vmem, size = 0x1000, scoped, tag = 'output window, operand 0, single buffered']
    %12 = vsyncpa [#allocation3], 0
    %13 = vsyncpa [#allocation6], 0
    %14 = vsyncpa [#allocation9], 0
    %15 = vsyncpa [#allocation12], 0
    %16 = vsyncpa [#allocation4], 0
    // Predicated region
    $region2: #{tpu_custom_call.1} parent=1 // pred_check
      _
    $region3: #{tpu_custom_call.1} parent=1 // pred_check_branch
      %18 = sbr.rel (0) target = $region5
    $region4: #{tpu_custom_call.1} parent=1 // pred_region
      %s20 = ssub.s32 128, 128
      %21 = vsyncadd [#allocation3], %s20
      %s23 = sshll.u32 [#allocation2], 4
      %s24 = int_to_ptr.vmem [resolvable:$true] %s23
      %26 = dma.hbm_to_vmem [thread:$0]  %s0, 128, %s24, [#allocation3]
    $region5: #{tpu_custom_call.1} parent=1 // pred_fallthru
      _
    // Predicated region
    $region6: #{tpu_custom_call.1} parent=1 // pred_check
      _
    $region7: #{tpu_custom_call.1} parent=1 // pred_check_branch
      %28 = sbr.rel (0) target = $region9
    $region8: #{tpu_custom_call.1} parent=1 // pred_region
      %s30 = ssub.s32 256, 256
      %31 = vsyncadd [#allocation6], %s30
      %s32 = sshll.u32 [#allocation5], 4
      %s33 = int_to_ptr.vmem [resolvable:$true] %s32
      %38 = dma.hbm_to_vmem [thread:$0]  %s1, 256, %s33, [#allocation6], 64, 64, 4
    $region9: #{tpu_custom_call.1} parent=1 // pred_fallthru
      _
    // Predicated region
    $region10: #{tpu_custom_call.1} parent=1 // pred_check
      _
    $region11: #{tpu_custom_call.1} parent=1 // pred_check_branch
      %40 = sbr.rel (0) target = $region13
    $region12: #{tpu_custom_call.1} parent=1 // pred_region
      %s42 = ssub.s32 1024, 1024
      %43 = vsyncadd [#allocation6], %s42
      %s44 = sshll.u32 [#allocation7], 4
      %s45 = int_to_ptr.vmem [resolvable:$true] %s44
      %50 = dma.hbm_to_vmem [thread:$0]  %s2, 1024, %s45, [#allocation6], 64, 64, 4
    $region13: #{tpu_custom_call.1} parent=1 // pred_fallthru
      _
    // Predicated region
    $region14: #{tpu_custom_call.1} parent=1 // pred_check
      _
    $region15: #{tpu_custom_call.1} parent=1 // pred_check_branch
      %52 = sbr.rel (0) target = $region17
    $region16: #{tpu_custom_call.1} parent=1 // pred_region
      %s54 = ssub.s32 1024, 1024
      %55 = vsyncadd [#allocation9], %s54
      %s56 = sshll.u32 [#allocation8], 4
      %s57 = int_to_ptr.vmem [resolvable:$true] %s56
      %62 = dma.hbm_to_vmem [thread:$0]  %s3, 1024, %s57, [#allocation9], 64, 64, 4
    $region17: #{tpu_custom_call.1} parent=1 // pred_fallthru
      _
    // Predicated region
    $region18: #{tpu_custom_call.1} parent=1 // pred_check
      _
    $region19: #{tpu_custom_call.1} parent=1 // pred_check_branch
      %64 = sbr.rel (0) target = $region21
    $region20: #{tpu_custom_call.1} parent=1 // pred_region
      %s66 = ssub.s32 16, 16
      %67 = vsyncadd [#allocation9], %s66
      %s69 = sshll.u32 [#allocation10], 4
      %s70 = int_to_ptr.vmem [resolvable:$true] %s69
      %72 = dma.hbm_to_vmem [thread:$0]  %s4, 16, %s70, [#allocation9]
    $region21: #{tpu_custom_call.1} parent=1 // pred_fallthru
      _
    // Predicated region
    $region22: #{tpu_custom_call.1} parent=1 // pred_check
      _
    $region23: #{tpu_custom_call.1} parent=1 // pred_check_branch
      %74 = sbr.rel (0) target = $region25
    $region24: #{tpu_custom_call.1} parent=1 // pred_region
      %s76 = ssub.s32 16, 16
      %77 = vsyncadd [#allocation12], %s76
      %s79 = sshll.u32 [#allocation11], 4
      %s80 = int_to_ptr.vmem [resolvable:$true] %s79
      %82 = dma.hbm_to_vmem [thread:$0]  %s5, 16, %s80, [#allocation12]
    $region25: #{tpu_custom_call.1} parent=1 // pred_fallthru
      _
    // Predicated region
    $region26: #{tpu_custom_call.1} parent=1 // pred_check
      _
    $region27: #{tpu_custom_call.1} parent=1 // pred_check_branch
      %84 = sbr.rel (0) target = $region29
    $region28: #{tpu_custom_call.1} parent=1 // pred_region
      %s86 = ssub.s32 16, 16
      %87 = vsyncadd [#allocation12], %s86
      %s89 = sshll.u32 [#allocation13], 4
      %s90 = int_to_ptr.vmem [resolvable:$true] %s89
      %92 = dma.hbm_to_vmem [thread:$0]  %s6, 16, %s90, [#allocation12]
    $region29: #{tpu_custom_call.1} parent=1 // pred_fallthru
      _
    // Predicated region
    $region30: #{tpu_custom_call.1} parent=1 // pred_check
      _
    $region31: #{tpu_custom_call.1} parent=1 // pred_check_branch
      %94 = sbr.rel (0) target = $region33
    $region32: #{tpu_custom_call.1} parent=1 // pred_region
      %95 = dma.done [#allocation3], 128
    $region33: #{tpu_custom_call.1} parent=1 // pred_fallthru
      _
    // Predicated region
    $region34: #{tpu_custom_call.1} parent=1 // pred_check
      _
    $region35: #{tpu_custom_call.1} parent=1 // pred_check_branch
      %97 = sbr.rel (0) target = $region37
    $region36: #{tpu_custom_call.1} parent=1 // pred_region
      %98 = dma.done [#allocation6], 256
    $region37: #{tpu_custom_call.1} parent=1 // pred_fallthru
      _
    // Predicated region
    $region38: #{tpu_custom_call.1} parent=1 // pred_check
      _
    $region39: #{tpu_custom_call.1} parent=1 // pred_check_branch
      %100 = sbr.rel (0) target = $region41
    $region40: #{tpu_custom_call.1} parent=1 // pred_region
      %101 = dma.done [#allocation6], 1024
    $region41: #{tpu_custom_call.1} parent=1 // pred_fallthru
      _
    // Predicated region
    $region42: #{tpu_custom_call.1} parent=1 // pred_check
      _
    $region43: #{tpu_custom_call.1} parent=1 // pred_check_branch
      %103 = sbr.rel (0) target = $region45
    $region44: #{tpu_custom_call.1} parent=1 // pred_region
      %104 = dma.done [#allocation9], 1024
    $region45: #{tpu_custom_call.1} parent=1 // pred_fallthru
      _
    // Predicated region
    $region46: #{tpu_custom_call.1} parent=1 // pred_check
      _
    $region47: #{tpu_custom_call.1} parent=1 // pred_check_branch
      %106 = sbr.rel (0) target = $region49
    $region48: #{tpu_custom_call.1} parent=1 // pred_region
      %107 = dma.done [#allocation9], 16
    $region49: #{tpu_custom_call.1} parent=1 // pred_fallthru
      _
    // Predicated region
    $region50: #{tpu_custom_call.1} parent=1 // pred_check
      _
    $region51: #{tpu_custom_call.1} parent=1 // pred_check_branch
      %109 = sbr.rel (0) target = $region53
    $region52: #{tpu_custom_call.1} parent=1 // pred_region
      %110 = dma.done [#allocation12], 16
    $region53: #{tpu_custom_call.1} parent=1 // pred_fallthru
      _
    // Predicated region
    $region54: #{tpu_custom_call.1} parent=1 // pred_check
      _
    $region55: #{tpu_custom_call.1} parent=1 // pred_check_branch
      %112 = sbr.rel (0) target = $region57
    $region56: #{tpu_custom_call.1} parent=1 // pred_region
      %113 = dma.done [#allocation12], 16
    $region57: #{tpu_custom_call.1} parent=1 // pred_fallthru
      _
    %v115 = vld [vmem:[#allocation2] sm:$0xff]
    %v116 = vpack.c.bf16 %v115, %v115
    %v117 = vld [vmem:[#allocation5] sm:$0xf]
    %v118 = vld [vmem:[#allocation5 + $0x4] sm:$0xf]
    %v119 = vld [vmem:[#allocation5 + $0x8] sm:$0xf]
    %v120 = vld [vmem:[#allocation5 + $0xc] sm:$0xf]
    %v121 = vld [vmem:[#allocation10] sm:$0x1]
    %v123 = vlaneseq
    %v124 = vshrl.u32 %v123, 7
    %v125 = vsub.s32 0, %v124
    %v126 = vrot.slane %v121, %v125
    %v132 = vunpack.c.l.b16 %v117
    %v133 = vunpack.c.l.b16 %v118
    %v134 = vunpack.c.l.b16 %v119
    %v135 = vunpack.c.l.b16 %v120
    %v136 = vpack.c.b16 %v133, %v132
    %v137 = vpack.c.b16 %v135, %v134
    %vm140 = vcmask 261120
    %v142 = vsel %vm140, %v116, 0
    %144 = vmatprep.subr.bf16.mxu0 0
    %145 = vmatpush1.bf16.msra.mxu0 %v136
    %146 = vmatprep.subr.bf16.mxu0 0
    %147 = vmatpush1.bf16.msra.mxu0 %v137
    %148 = vmatprep.subr.bf16.mxu0 0
    %149 = vmatpush1.bf16.msra.mxu0 0
    %150 = vmatprep.subr.bf16.mxu0 0
    %151 = vmatpush1.bf16.msra.mxu0 0
    %152 = vmatprep.subr.bf16.mxu0 0
    %153 = vmatpush1.bf16.msra.mxu0 0
    %154 = vmatprep.subr.bf16.mxu0 0
    %155 = vmatpush1.bf16.msra.mxu0 0
    %156 = vmatprep.subr.bf16.mxu0 0
    %157 = vmatpush1.bf16.msra.mxu0 0
    %158 = vmatprep.subr.bf16.mxu0 0
    %159 = vmatpush1.bf16.msra.mxu0 0
    %160 = vmatprep.subr.bf16.mxu0 0
    %161 = vmatpush1.bf16.msra.mxu0 0
    %162 = vmatprep.subr.bf16.mxu0 0
    %163 = vmatpush1.bf16.msra.mxu0 0
    %164 = vmatprep.subr.bf16.mxu0 0
    %165 = vmatpush1.bf16.msra.mxu0 0
    %166 = vmatprep.subr.bf16.mxu0 0
    %167 = vmatpush1.bf16.msra.mxu0 0
    %168 = vmatprep.subr.bf16.mxu0 0
    %169 = vmatpush1.bf16.msra.mxu0 0
    %170 = vmatprep.subr.bf16.mxu0 0
    %171 = vmatpush1.bf16.msra.mxu0 0
    %172 = vmatprep.subr.bf16.mxu0 0
    %173 = vmatpush1.bf16.msra.mxu0 0
    %174 = vmatprep.subr.bf16.mxu0 0
    %175 = vmatpush1.bf16.msra.mxu0 0
    %176 = vmatprep.mubr.bf16.mxu0 0
    %177 = vmatmul.mubr.bf16.gmra.mrb[0].mxu0 %v142
    %v178 = vpop.f32.mrb[0].mxu0
    %v179 = vadd.f32 %v126, %v178
    %v180 = vpop.f32.mrb[0].mxu0
    %v181 = vpop.f32.mrb[0].mxu0
    %v182 = vpop.f32.mrb[0].mxu0
    %183 = vdwg.mxu0
    %v184 = vmax.f32 %v179, 0.0
    %v185 = vpack.c.bf16 %v184, %v184
    %v186 = vld [vmem:[#allocation7] sm:$0xf]
    %v187 = vld [vmem:[#allocation7 + $0x4] sm:$0xf]
    %v188 = vld [vmem:[#allocation7 + $0x8] sm:$0xf]
    %v189 = vld [vmem:[#allocation7 + $0xc] sm:$0xf]
    %v190 = vld [vmem:[#allocation7 + $0x10] sm:$0xf]
    %v191 = vld [vmem:[#allocation7 + $0x14] sm:$0xf]
    %v192 = vld [vmem:[#allocation7 + $0x18] sm:$0xf]
    %v193 = vld [vmem:[#allocation7 + $0x1c] sm:$0xf]
    %v194 = vld [vmem:[#allocation7 + $0x20] sm:$0xf]
    %v195 = vld [vmem:[#allocation7 + $0x24] sm:$0xf]
    %v196 = vld [vmem:[#allocation7 + $0x28] sm:$0xf]
    %v197 = vld [vmem:[#allocation7 + $0x2c] sm:$0xf]
    %v198 = vld [vmem:[#allocation7 + $0x30] sm:$0xf]
    %v199 = vld [vmem:[#allocation7 + $0x34] sm:$0xf]
    %v200 = vld [vmem:[#allocation7 + $0x38] sm:$0xf]
    %v201 = vld [vmem:[#allocation7 + $0x3c] sm:$0xf]
    %v202 = vld [vmem:[#allocation11] sm:$0x1]
    %v204 = vlaneseq
    %v205 = vshrl.u32 %v204, 7
    %v206 = vsub.s32 0, %v205
    %v207 = vrot.slane %v202, %v206
    %v225 = vunpack.c.l.b16 %v186
    %v226 = vunpack.c.l.b16 %v187
    %v227 = vunpack.c.l.b16 %v188
    %v228 = vunpack.c.l.b16 %v189
    %v229 = vunpack.c.l.b16 %v190
    %v230 = vunpack.c.l.b16 %v191
    %v231 = vunpack.c.l.b16 %v192
    %v232 = vunpack.c.l.b16 %v193
    %v233 = vunpack.c.l.b16 %v194
    %v234 = vunpack.c.l.b16 %v195
    %v235 = vunpack.c.l.b16 %v196
    %v236 = vunpack.c.l.b16 %v197
    %v237 = vunpack.c.l.b16 %v198
    %v238 = vunpack.c.l.b16 %v199
    %v239 = vunpack.c.l.b16 %v200
    %v240 = vunpack.c.l.b16 %v201
    %v241 = vpack.c.b16 %v226, %v225
    %v242 = vpack.c.b16 %v228, %v227
    %v243 = vpack.c.b16 %v230, %v229
    %v244 = vpack.c.b16 %v232, %v231
    %v245 = vpack.c.b16 %v234, %v233
    %v246 = vpack.c.b16 %v236, %v235
    %v247 = vpack.c.b16 %v238, %v237
    %v248 = vpack.c.b16 %v240, %v239
    %257 = vmatprep.subr.bf16.mxu0 0
    %258 = vmatpush1.bf16.msra.mxu0 %v241
    %259 = vmatprep.subr.bf16.mxu0 0
    %260 = vmatpush1.bf16.msra.mxu0 %v242
    %261 = vmatprep.subr.bf16.mxu0 0
    %262 = vmatpush1.bf16.msra.mxu0 %v243
    %263 = vmatprep.subr.bf16.mxu0 0
    %264 = vmatpush1.bf16.msra.mxu0 %v244
    %265 = vmatprep.subr.bf16.mxu0 0
    %266 = vmatpush1.bf16.msra.mxu0 %v245
    %267 = vmatprep.subr.bf16.mxu0 0
    %268 = vmatpush1.bf16.msra.mxu0 %v246
    %269 = vmatprep.subr.bf16.mxu0 0
    %270 = vmatpush1.bf16.msra.mxu0 %v247
    %271 = vmatprep.subr.bf16.mxu0 0
    %272 = vmatpush1.bf16.msra.mxu0 %v248
    %273 = vmatprep.subr.bf16.mxu0 0
    %274 = vmatpush1.bf16.msra.mxu0 0
    %275 = vmatprep.subr.bf16.mxu0 0
    %276 = vmatpush1.bf16.msra.mxu0 0
    %277 = vmatprep.subr.bf16.mxu0 0
    %278 = vmatpush1.bf16.msra.mxu0 0
    %279 = vmatprep.subr.bf16.mxu0 0
    %280 = vmatpush1.bf16.msra.mxu0 0
    %281 = vmatprep.subr.bf16.mxu0 0
    %282 = vmatpush1.bf16.msra.mxu0 0
    %283 = vmatprep.subr.bf16.mxu0 0
    %284 = vmatpush1.bf16.msra.mxu0 0
    %285 = vmatprep.subr.bf16.mxu0 0
    %286 = vmatpush1.bf16.msra.mxu0 0
    %287 = vmatprep.subr.bf16.mxu0 0
    %288 = vmatpush1.bf16.msra.mxu0 0
    %289 = vmatprep.mubr.bf16.mxu0 0
    %290 = vmatmul.mubr.bf16.gmra.mrb[0].mxu0 %v185
    %v291 = vpop.f32.mrb[0].mxu0
    %v292 = vadd.f32 %v207, %v291
    %v293 = vpop.f32.mrb[0].mxu0
    %v294 = vpop.f32.mrb[0].mxu0
    %v295 = vpop.f32.mrb[0].mxu0
    %296 = vdwg.mxu0
    %v297 = vmax.f32 %v292, 0.0
    %v298 = vpack.c.bf16 %v297, %v297
    %v299 = vld [vmem:[#allocation8] sm:$0xf]
    %v300 = vld [vmem:[#allocation8 + $0x4] sm:$0xf]
    %v301 = vld [vmem:[#allocation8 + $0x8] sm:$0xf]
    %v302 = vld [vmem:[#allocation8 + $0xc] sm:$0xf]
    %v303 = vld [vmem:[#allocation8 + $0x10] sm:$0xf]
    %v304 = vld [vmem:[#allocation8 + $0x14] sm:$0xf]
    %v305 = vld [vmem:[#allocation8 + $0x18] sm:$0xf]
    %v306 = vld [vmem:[#allocation8 + $0x1c] sm:$0xf]
    %v307 = vld [vmem:[#allocation8 + $0x20] sm:$0xf]
    %v308 = vld [vmem:[#allocation8 + $0x24] sm:$0xf]
    %v309 = vld [vmem:[#allocation8 + $0x28] sm:$0xf]
    %v310 = vld [vmem:[#allocation8 + $0x2c] sm:$0xf]
    %v311 = vld [vmem:[#allocation8 + $0x30] sm:$0xf]
    %v312 = vld [vmem:[#allocation8 + $0x34] sm:$0xf]
    %v313 = vld [vmem:[#allocation8 + $0x38] sm:$0xf]
    %v314 = vld [vmem:[#allocation8 + $0x3c] sm:$0xf]
    %v315 = vld [vmem:[#allocation13] sm:$0x1]
    %v317 = vlaneseq
    %v318 = vshrl.u32 %v317, 7
    %v319 = vsub.s32 0, %v318
    %v320 = vrot.slane %v315, %v319
    %v338 = vunpack.c.l.b16 %v299
    %v339 = vunpack.c.l.b16 %v300
    %v340 = vunpack.c.l.b16 %v301
    %v341 = vunpack.c.l.b16 %v302
    %v342 = vunpack.c.l.b16 %v303
    %v343 = vunpack.c.l.b16 %v304
    %v344 = vunpack.c.l.b16 %v305
    %v345 = vunpack.c.l.b16 %v306
    %v346 = vunpack.c.l.b16 %v307
    %v347 = vunpack.c.l.b16 %v308
    %v348 = vunpack.c.l.b16 %v309
    %v349 = vunpack.c.l.b16 %v310
    %v350 = vunpack.c.l.b16 %v311
    %v351 = vunpack.c.l.b16 %v312
    %v352 = vunpack.c.l.b16 %v313
    %v353 = vunpack.c.l.b16 %v314
    %v354 = vpack.c.b16 %v339, %v338
    %v355 = vpack.c.b16 %v341, %v340
    %v356 = vpack.c.b16 %v343, %v342
    %v357 = vpack.c.b16 %v345, %v344
    %v358 = vpack.c.b16 %v347, %v346
    %v359 = vpack.c.b16 %v349, %v348
    %v360 = vpack.c.b16 %v351, %v350
    %v361 = vpack.c.b16 %v353, %v352
    %370 = vmatprep.subr.bf16.mxu0 0
    %371 = vmatpush1.bf16.msra.mxu0 %v354
    %372 = vmatprep.subr.bf16.mxu0 0
    %373 = vmatpush1.bf16.msra.mxu0 %v355
    %374 = vmatprep.subr.bf16.mxu0 0
    %375 = vmatpush1.bf16.msra.mxu0 %v356
    %376 = vmatprep.subr.bf16.mxu0 0
    %377 = vmatpush1.bf16.msra.mxu0 %v357
    %378 = vmatprep.subr.bf16.mxu0 0
    %379 = vmatpush1.bf16.msra.mxu0 %v358
    %380 = vmatprep.subr.bf16.mxu0 0
    %381 = vmatpush1.bf16.msra.mxu0 %v359
    %382 = vmatprep.subr.bf16.mxu0 0
    %383 = vmatpush1.bf16.msra.mxu0 %v360
    %384 = vmatprep.subr.bf16.mxu0 0
    %385 = vmatpush1.bf16.msra.mxu0 %v361
    %386 = vmatprep.subr.bf16.mxu0 0
    %387 = vmatpush1.bf16.msra.mxu0 0
    %388 = vmatprep.subr.bf16.mxu0 0
    %389 = vmatpush1.bf16.msra.mxu0 0
    %390 = vmatprep.subr.bf16.mxu0 0
    %391 = vmatpush1.bf16.msra.mxu0 0
    %392 = vmatprep.subr.bf16.mxu0 0
    %393 = vmatpush1.bf16.msra.mxu0 0
    %394 = vmatprep.subr.bf16.mxu0 0
    %395 = vmatpush1.bf16.msra.mxu0 0
    %396 = vmatprep.subr.bf16.mxu0 0
    %397 = vmatpush1.bf16.msra.mxu0 0
    %398 = vmatprep.subr.bf16.mxu0 0
    %399 = vmatpush1.bf16.msra.mxu0 0
    %400 = vmatprep.subr.bf16.mxu0 0
    %401 = vmatpush1.bf16.msra.mxu0 0
    %402 = vmatprep.mubr.bf16.mxu0 0
    %403 = vmatmul.mubr.bf16.gmra.mrb[0].mxu0 %v298
    %v404 = vpop.f32.mrb[0].mxu0
    %v405 = vadd.f32 %v320, %v404
    %v406 = vpop.f32.mrb[0].mxu0
    %v407 = vpop.f32.mrb[0].mxu0
    %v408 = vpop.f32.mrb[0].mxu0
    %409 = vdwg.mxu0
    %v410 = vxor.u32 %v405, 2147483648
    %v411 = vmul.f32 %v410, 1.442695
    %v412 = vpow.pop %v411
    %v413 = vadd.f32 %v412, 1.0
    %v414 = vrcp.pop %v413
    %v415 = vmul.f32 1.0, %v414
    %416 = vst [vmem:[#allocation14] sm:$0xff] %v415
    // Predicated region
    $region58: #{tpu_custom_call.1} parent=1 // pred_check
      _
    $region59: #{tpu_custom_call.1} parent=1 // pred_check_branch
      %418 = sbr.rel (0) target = $region61
    $region60: #{tpu_custom_call.1} parent=1 // pred_region
      %s420 = ssub.s32 128, 128
      %421 = vsyncadd [#allocation4], %s420
      %s423 = sshll.u32 [#allocation14], 4
      %s424 = int_to_ptr.vmem [resolvable:$true] %s423
      %426 = dma.vmem_to_hbm [thread:$0]  %s424, 128, %s7, [#allocation4]
    $region61: #{tpu_custom_call.1} parent=1 // pred_fallthru
      _
    // Predicated region
    $region62: #{tpu_custom_call.1} parent=1 // pred_check
      _
    $region63: #{tpu_custom_call.1} parent=1 // pred_check_branch
      %428 = sbr.rel (0) target = $region65
    $region64: #{tpu_custom_call.1} parent=1 // pred_region
      %429 = dma.done [#allocation4], 128
    $region65: #{tpu_custom_call.1} parent=1 // pred_fallthru
      _
    %430 = vsyncpa [#allocation3], 1
    %431 = vsyncpa [#allocation6], 1
    %432 = vsyncpa [#allocation9], 1
    %433 = vsyncpa [#allocation12], 1
    %434 = vsyncpa [#allocation4], 1

</llo_original>
